<compile_context>
chip_gen: v5e
topology: v5e:2x2
jax: 0.10.0
libtpu: 0.0.40
codegen_flags: <defaults>
</compile_context>

<pallas_src>
import functools
import inspect

import jax
import jax.numpy as jnp
from jax.experimental import pallas as pl
from jax.experimental.pallas import tpu as pltpu

_LANE = 128     # pad every feature dim to a multiple of this (lane width)
_SUBLANE = 8    # pad / tile the batch dim at multiples of this (sublane width)


def _round_up(n, m):
    return ((n + m - 1) // m) * m


# Single-buffer grid-invariant operands when the installed JAX supports it.
_HAS_PIPELINE_MODE = (
    "pipeline_mode" in inspect.signature(pl.BlockSpec).parameters
    and hasattr(pl, "Buffered")
)


def _resident_spec(shape):
    """BlockSpec for a grid-invariant operand (weight / bias).

    Its index_map is constant, so a second pipeline buffer is pure VMEM waste;
    single-buffering halves resident weight VMEM (matters on v7x's 64 MiB).
    """
    if _HAS_PIPELINE_MODE:
        return pl.BlockSpec(shape, lambda i: (0, 0), pipeline_mode=pl.Buffered(1))
    return pl.BlockSpec(shape, lambda i: (0, 0))


def _netfc_fused_kernel(n_layers, x_ref, *refs):
    """Entire NetFC stack (eval mode) fused into one kernel.

    Per layer:  h = relu(h @ W' + b')
    (W', b') carry the folded eval-mode BatchNorm affine and the Linear bias;
    Dropout is identity in eval mode.  Matmul operands are bf16 (MXU-native on
    v5e/v6e/v7x), accumulation + bias/ReLU epilogue are f32.  The intermediate
    activation never leaves vregs/VMEM.
    """
    out_ref = refs[-1]
    layer_refs = refs[:-1]

    h = x_ref[...]                          # (tile_b, F_in_p) bf16
    for i in range(n_layers):               # static unroll over layers
        w = layer_refs[2 * i][...]          # (F_in_p, F_out_p) bf16, BN-folded
        b = layer_refs[2 * i + 1][...]      # (1, F_out_p)      f32,  BN-folded
        z = jnp.dot(h, w, preferred_element_type=jnp.float32) + b
        z = jnp.maximum(z, 0.0)             # ReLU in f32 (VPU)
        h = z.astype(jnp.bfloat16) if i < n_layers - 1 else z
    out_ref[...] = h.astype(out_ref.dtype)


def netfc_fused(x_padded, folded_params, *, tile_b):
    """Run the fused NetFC forward via a single pallas_call (padded shapes)."""
    batch_p, f_in0_p = x_padded.shape
    f_out_last_p = folded_params[-1][0].shape[1]
    n_layers = len(folded_params)
    grid = (batch_p // tile_b,)

    in_specs = [pl.BlockSpec((tile_b, f_in0_p), lambda i: (i, 0))]
    flat_args = [x_padded]
    for wt, bf in folded_params:
        in_specs.append(_resident_spec(wt.shape))
        in_specs.append(_resident_spec(bf.shape))
        flat_args.append(wt)
        flat_args.append(bf)
    out_specs = pl.BlockSpec((tile_b, f_out_last_p), lambda i: (i, 0))

    # --- explicit VMEM budget (with headroom), clamped to a safe range ------
    weight_bytes = sum(
        wt.size * wt.dtype.itemsize + bf.size * bf.dtype.itemsize
        for wt, bf in folded_params
    )
    weight_bufs = 1 if _HAS_PIPELINE_MODE else 2
    max_f = max([f_in0_p] + [wt.shape[1] for wt, _ in folded_params])
    io_bytes = 2 * (tile_b * f_in0_p * 2) + 2 * (tile_b * f_out_last_p * 4)
    act_bytes = 3 * tile_b * max_f * 4      # live activation / spill headroom
    need = weight_bufs * weight_bytes + io_bytes + act_bytes
    vmem_limit = int(min(max(2 * need, 16 * 1024 * 1024), 64 * 1024 * 1024))

    flops = int(sum(2 * batch_p * wt.shape[0] * wt.shape[1]
                    for wt, _ in folded_params))
    bytes_accessed = int(x_padded.size * 2 + weight_bytes
                         + batch_p * f_out_last_p * 4)

    # TODO(synk): for very wide layers (bf16 weight > ~8-16 MiB) stream K/N
    # weight tiles from HBM (memory_space=pl.ANY + pltpu.emit_pipeline) instead
    # of materializing the whole (F_in_p, F_out_p) block in VMEM; and consider
    # int8 (v5e/v6e) / fp8 (v7x) folded weights for weight-bandwidth-bound
    # small-batch inference.  Unnecessary at these sizes.
    return pl.pallas_call(
        functools.partial(_netfc_fused_kernel, n_layers),
        out_shape=jax.ShapeDtypeStruct((batch_p, f_out_last_p), jnp.float32),
        grid=grid,
        in_specs=in_specs,
        out_specs=out_specs,
        compiler_params=pltpu.CompilerParams(
            dimension_semantics=("parallel",),
            vmem_limit_bytes=vmem_limit,
        ),
        cost_estimate=pl.CostEstimate(
            flops=flops, transcendentals=0, bytes_accessed=bytes_accessed
        ),
    )(*flat_args)


def init_netfc_raw_params(key, n_features):
    """Deterministic parameter init mirroring PyTorch defaults."""
    params = []
    for f_in, f_out in zip(n_features[:-1], n_features[1:]):
        key, kw, kb = jax.random.split(key, 3)
        bound = 1.0 / jnp.sqrt(jnp.float32(f_in))
        w = jax.random.uniform(kw, (f_out, f_in), jnp.float32, -bound, bound)
        b = jax.random.uniform(kb, (f_out,), jnp.float32, -bound, bound)
        gamma = jnp.ones((f_out,), jnp.float32)         # BN weight default
        beta = jnp.zeros((f_out,), jnp.float32)         # BN bias default
        running_mean = jnp.zeros((f_out,), jnp.float32)
        running_var = jnp.ones((f_out,), jnp.float32)
        params.append((w, b, gamma, beta, running_mean, running_var))
    return params


def fold_params(raw_params, eps=1e-5):
    """Fold eval-mode BatchNorm + Linear bias, pad to lane multiples, ONCE.

    scale = gamma / sqrt(var + eps); shift = beta - mean*scale
    W' = W^T * scale (bf16, zero-padded to 128-multiples)
    b' = b*scale + shift (f32, zero-padded columns are exactly 0)
    """
    folded = []
    for (w, b, gamma, beta, rm, rv) in raw_params:
        f_out, f_in = w.shape
        scale = gamma / jnp.sqrt(rv + eps)                 # (F_out,)
        shift = beta - rm * scale                          # (F_out,)
        wt = (w.T * scale[None, :]).astype(jnp.float32)    # (F_in, F_out)
        bf = (b * scale + shift).astype(jnp.float32)       # (F_out,)

        f_in_p = _round_up(f_in, _LANE)
        f_out_p = _round_up(f_out, _LANE)
        wt_p = jnp.zeros((f_in_p, f_out_p), jnp.bfloat16)
        wt_p = wt_p.at[:f_in, :f_out].set(wt.astype(jnp.bfloat16))
        bf_p = jnp.zeros((1, f_out_p), jnp.float32)
        bf_p = bf_p.at[0, :f_out].set(bf)
        folded.append((wt_p, bf_p))
    return folded


@functools.partial(jax.jit, static_argnames=("f_out_true",))
def netfc_forward(x, folded_params, f_out_true):
    """NetFC.forward == self.net(x): the stacked LayerBlocks, fully fused.

    Pads batch (to a multiple of 8 / tile_b) and features (to 128 multiples),
    runs the fused kernel, then slices the padding off so downstream consumers
    never see padded columns/rows.
    TODO(synk): training-mode Dropout / batch-stat BN not implemented
    (eval-mode semantics reproduced instead).
    """
    batch, f_in = x.shape
    f_in_p = folded_params[0][0].shape[0]

    b8 = _round_up(batch, _SUBLANE)
    # Whole (small) batch in one block; 256-row tiles for large batches so the
    # parallel grid axis has >=2 steps (v7x megacore).
    # TODO(synk): sweep tile_b up to 512 on v6e (128 MiB VMEM) for big batches.
    tile_b = b8 if b8 <= 256 else 256
    batch_p = _round_up(b8, tile_b)

    x_p = jnp.zeros((batch_p, f_in_p), jnp.bfloat16)
    x_p = x_p.at[:batch, :f_in].set(x.astype(jnp.bfloat16))

    out_p = netfc_fused(x_p, folded_params, tile_b=tile_b)
    return out_p[:batch, :f_out_true]


if __name__ == "__main__":
    key = jax.random.PRNGKey(0)
    n_features = [32, 64, 48]   # two LayerBlocks: 32->64, 64->48
    batch = 8

    kx, kp = jax.random.split(key)
    x = jax.random.normal(kx, (batch, n_features[0]), jnp.float32)
    raw_params = init_netfc_raw_params(kp, n_features)
    folded_params = fold_params(raw_params)   # hoisted out of the forward path

    out = netfc_forward(x, folded_params, n_features[-1])
    jax.block_until_ready(out)

    # Sanity check vs. plain-JAX f32 reference of the same eval-mode math,
    # computed from the ORIGINAL (unfolded) parameters.  Tolerance reflects
    # bf16 matmul operands (accumulation is f32).
    ref = x
    for (w, b, gamma, beta, rm, rv) in raw_params:
        z = ref @ w.T + b
        z = (z - rm) / jnp.sqrt(rv + 1e-5) * gamma + beta
        ref = jnp.maximum(z, 0.0)
    assert out.shape == (batch, n_features[-1])
    assert jnp.allclose(out, ref, atol=1e-1, rtol=5e-2), (
        float(jnp.max(jnp.abs(out - ref))))

    print("KERNEL_OK")
</pallas_src>

<mosaic_0001>
module attributes {stable_mosaic.version = 11 : i64} {
  func.func @_netfc_fused_kernel(%arg0: i32, %arg1: memref<8x128xbf16, #tpu.memory_space<vmem>>, %arg2: memref<128x128xbf16, #tpu.memory_space<vmem>>, %arg3: memref<1x128xf32, #tpu.memory_space<vmem>>, %arg4: memref<128x128xbf16, #tpu.memory_space<vmem>>, %arg5: memref<1x128xf32, #tpu.memory_space<vmem>>, %arg6: memref<8x128xf32, #tpu.memory_space<vmem>>) attributes {dimension_semantics = [#tpu.dimension_semantics<parallel>], iteration_bounds = array<i64: 1>, scalar_prefetch = 0 : i64, scratch_operands = 0 : i64, tpu.core_type = #tpu.core_type<tc>, window_params = [{transform_indices = @transform_0, window_bounds = array<i64: 8, 128>}, {pipeline_mode = #tpu.pipeline_mode<synchronous>, transform_indices = @transform_1, window_bounds = array<i64: 128, 128>}, {pipeline_mode = #tpu.pipeline_mode<synchronous>, transform_indices = @transform_2, window_bounds = array<i64: 1, 128>}, {pipeline_mode = #tpu.pipeline_mode<synchronous>, transform_indices = @transform_3, window_bounds = array<i64: 128, 128>}, {pipeline_mode = #tpu.pipeline_mode<synchronous>, transform_indices = @transform_4, window_bounds = array<i64: 1, 128>}, {transform_indices = @transform_5, window_bounds = array<i64: 8, 128>}]} {
    %c0 = arith.constant 0 : index
    %c0_0 = arith.constant 0 : index
    %0 = vector.load %arg1[%c0, %c0_0] : memref<8x128xbf16, #tpu.memory_space<vmem>>, vector<8x128xbf16>
    %c0_1 = arith.constant 0 : index
    %c0_2 = arith.constant 0 : index
    %1 = vector.load %arg2[%c0_1, %c0_2] : memref<128x128xbf16, #tpu.memory_space<vmem>>, vector<128x128xbf16>
    %c0_3 = arith.constant 0 : index
    %c0_4 = arith.constant 0 : index
    %2 = vector.load %arg3[%c0_3, %c0_4] : memref<1x128xf32, #tpu.memory_space<vmem>>, vector<1x128xf32>
    %cst = arith.constant dense<0.000000e+00> : vector<8x128xf32>
    %3 = tpu.matmul %0, %1, %cst {dimension_numbers = #tpu.dot_dimension_numbers<[1], [0], [0], [1], [0, 0, 1, 1], [], []>} : vector<8x128xbf16>, vector<128x128xbf16>, vector<8x128xf32> -> vector<8x128xf32>
    %4 = vector.broadcast %2 : vector<1x128xf32> to vector<8x128xf32>
    %5 = arith.addf %3, %4 : vector<8x128xf32>
    %cst_5 = arith.constant 0.000000e+00 : f32
    %6 = vector.broadcast %cst_5 : f32 to vector<8x128xf32>
    %7 = arith.maximumf %5, %6 : vector<8x128xf32>
    %8 = arith.truncf %7 : vector<8x128xf32> to vector<8x128xbf16>
    %c0_6 = arith.constant 0 : index
    %c0_7 = arith.constant 0 : index
    %9 = vector.load %arg4[%c0_6, %c0_7] : memref<128x128xbf16, #tpu.memory_space<vmem>>, vector<128x128xbf16>
    %c0_8 = arith.constant 0 : index
    %c0_9 = arith.constant 0 : index
    %10 = vector.load %arg5[%c0_8, %c0_9] : memref<1x128xf32, #tpu.memory_space<vmem>>, vector<1x128xf32>
    %cst_10 = arith.constant dense<0.000000e+00> : vector<8x128xf32>
    %11 = tpu.matmul %8, %9, %cst_10 {dimension_numbers = #tpu.dot_dimension_numbers<[1], [0], [0], [1], [0, 0, 1, 1], [], []>} : vector<8x128xbf16>, vector<128x128xbf16>, vector<8x128xf32> -> vector<8x128xf32>
    %12 = vector.broadcast %10 : vector<1x128xf32> to vector<8x128xf32>
    %13 = arith.addf %11, %12 : vector<8x128xf32>
    %cst_11 = arith.constant 0.000000e+00 : f32
    %14 = vector.broadcast %cst_11 : f32 to vector<8x128xf32>
    %15 = arith.maximumf %13, %14 : vector<8x128xf32>
    %c0_12 = arith.constant 0 : index
    %c0_13 = arith.constant 0 : index
    %16 = vector.load %arg6[%c0_12, %c0_13] : memref<8x128xf32, #tpu.memory_space<vmem>>, vector<8x128xf32>
    tpu.vector_store %arg6[%c0_12, %c0_13], %15 {strides = array<i32>} : memref<8x128xf32, #tpu.memory_space<vmem>>, vector<8x128xf32>,
    return
  }
  func.func @transform_0(%arg0: i32) -> (i32, i32) {
    %c0_i32 = arith.constant 0 : i32
    %c0_i32_0 = arith.constant 0 : i32
    return %arg0, %c0_i32 : i32, i32
  }
  func.func @transform_1(%arg0: i32) -> (i32, i32) {
    %c0_i32 = arith.constant 0 : i32
    %c0_i32_0 = arith.constant 0 : i32
    %c0_i32_1 = arith.constant 0 : i32
    return %c0_i32, %c0_i32_0 : i32, i32
  }
  func.func @transform_2(%arg0: i32) -> (i32, i32) {
    %c0_i32 = arith.constant 0 : i32
    %c0_i32_0 = arith.constant 0 : i32
    %c0_i32_1 = arith.constant 0 : i32
    return %c0_i32, %c0_i32_0 : i32, i32
  }
  func.func @transform_3(%arg0: i32) -> (i32, i32) {
    %c0_i32 = arith.constant 0 : i32
    %c0_i32_0 = arith.constant 0 : i32
    %c0_i32_1 = arith.constant 0 : i32
    return %c0_i32, %c0_i32_0 : i32, i32
  }
  func.func @transform_4(%arg0: i32) -> (i32, i32) {
    %c0_i32 = arith.constant 0 : i32
    %c0_i32_0 = arith.constant 0 : i32
    %c0_i32_1 = arith.constant 0 : i32
    return %c0_i32, %c0_i32_0 : i32, i32
  }
  func.func @transform_5(%arg0: i32) -> (i32, i32) {
    %c0_i32 = arith.constant 0 : i32
    %c0_i32_0 = arith.constant 0 : i32
    return %arg0, %c0_i32 : i32, i32
  }
}

</mosaic_0001>

<llo_original>
// kernel: netfc_forward.1
$region0: #{netfc_forward.1}
  #allocation0 [shape = 'u32[]', space=smem, size = 0x4, offset = 0x4, fixed_abs, tag = 'smem constant byte address 0x4 - core index']
  #allocation1 [shape = 'u32[72,128]{1,0:T(1,128)}', space=vmem, size = 0x9000, scoped, tag = 'internal scratch']
  %s0 = inlined_call_operand.vmem [shape: bf16[8,128], index: 0, kind: input, shape index: {}]
  %s1 = inlined_call_operand.hbm [shape: bf16[128,128], index: 1, kind: input, shape index: {}]
  %s2 = inlined_call_operand.vmem [shape: f32[1,128], index: 2, kind: input, shape index: {}]
  %s3 = inlined_call_operand.hbm [shape: bf16[128,128], index: 3, kind: input, shape index: {}]
  %s4 = inlined_call_operand.vmem [shape: f32[1,128], index: 4, kind: input, shape index: {}]
  %s5 = inlined_call_operand.hbm [shape: f32[8,128], index: 5, kind: output, shape index: {}]
  %s6 = sld [smem:[#allocation0]]
  $region38: #{netfc_forward.1} parent=0
    _
  %s8 = ssub.s32 1, %s6
  %s9 = scalar_select 0, %s8, %s6
  $region1: #{netfc_forward.1} parent=0
    #allocation2 [shape = 'u8[32768]{0}', space=vmem, size = 0x8000, scoped, tag = 'input window, operand 1, single buffered']
    #allocation3 [shape = 's32[1]{0}', space=sflag, size = 0x4, scoped, tag = 'scoped memory for netfc_forward.1']
    #allocation4 [shape = 's32[1]{0}', space=sflag, size = 0x4, scoped, tag = 'scoped memory for netfc_forward.1']
    #allocation5 [shape = 'u8[32768]{0}', space=vmem, size = 0x8000, scoped, tag = 'input window, operand 3, single buffered']
    #allocation6 [shape = 's32[1]{0}', space=sflag, size = 0x4, scoped, tag = 'scoped memory for netfc_forward.1']
    #allocation7 [shape = 'u8[4096]{0}', space=vmem, size = 0x1000, scoped, tag = 'output window, operand 0, single buffered']
    %10 = vsyncpa [#allocation3], 0
    %11 = vsyncpa [#allocation6], 0
    %12 = vsyncpa [#allocation4], 0
    // Predicated region
    $region2: #{netfc_forward.1} parent=1 // pred_check
      _
    $region3: #{netfc_forward.1} parent=1 // pred_check_branch
      %14 = sbr.rel (0) target = $region5
    $region4: #{netfc_forward.1} parent=1 // pred_region
      _
    $region5: #{netfc_forward.1} parent=1 // pred_fallthru
      _
    // Predicated region
    $region6: #{netfc_forward.1} parent=1 // pred_check
      _
    $region7: #{netfc_forward.1} parent=1 // pred_check_branch
      %16 = sbr.rel (0) target = $region9
    $region8: #{netfc_forward.1} parent=1 // pred_region
      %18 = vsyncadd [#allocation3], 0
      %s19 = sshll.u32 %s1, 4
      %s20 = int_to_ptr.hbm [resolvable:$true] %s19
      %s21 = sshll.u32 [#allocation2], 4
      %s22 = int_to_ptr.vmem [resolvable:$true] %s21
      %27 = dma.hbm_to_vmem [thread:$0]  %s20, 1024, %s22, [#allocation3], 64, 64, 4
    $region9: #{netfc_forward.1} parent=1 // pred_fallthru
      _
    // Predicated region
    $region10: #{netfc_forward.1} parent=1 // pred_check
      _
    $region11: #{netfc_forward.1} parent=1 // pred_check_branch
      %29 = sbr.rel (0) target = $region13
    $region12: #{netfc_forward.1} parent=1 // pred_region
      _
    $region13: #{netfc_forward.1} parent=1 // pred_fallthru
      _
    // Predicated region
    $region14: #{netfc_forward.1} parent=1 // pred_check
      _
    $region15: #{netfc_forward.1} parent=1 // pred_check_branch
      %31 = sbr.rel (0) target = $region17
    $region16: #{netfc_forward.1} parent=1 // pred_region
      %33 = vsyncadd [#allocation6], 0
      %s34 = sshll.u32 %s3, 4
      %s35 = int_to_ptr.hbm [resolvable:$true] %s34
      %s36 = sshll.u32 [#allocation5], 4
      %s37 = int_to_ptr.vmem [resolvable:$true] %s36
      %42 = dma.hbm_to_vmem [thread:$0]  %s35, 1024, %s37, [#allocation6], 64, 64, 4
    $region17: #{netfc_forward.1} parent=1 // pred_fallthru
      _
    // Predicated region
    $region18: #{netfc_forward.1} parent=1 // pred_check
      _
    $region19: #{netfc_forward.1} parent=1 // pred_check_branch
      %44 = sbr.rel (0) target = $region21
    $region20: #{netfc_forward.1} parent=1 // pred_region
      _
    $region21: #{netfc_forward.1} parent=1 // pred_fallthru
      _
    // Predicated region
    $region22: #{netfc_forward.1} parent=1 // pred_check
      _
    $region23: #{netfc_forward.1} parent=1 // pred_check_branch
      %46 = sbr.rel (0) target = $region25
    $region24: #{netfc_forward.1} parent=1 // pred_region
      %48 = dma.done [#allocation3], 1024
    $region25: #{netfc_forward.1} parent=1 // pred_fallthru
      _
    // Predicated region
    $region26: #{netfc_forward.1} parent=1 // pred_check
      _
    $region27: #{netfc_forward.1} parent=1 // pred_check_branch
      %50 = sbr.rel (0) target = $region29
    $region28: #{netfc_forward.1} parent=1 // pred_region
      %52 = dma.done [#allocation6], 1024
    $region29: #{netfc_forward.1} parent=1 // pred_fallthru
      _
    %v53 = vld [vmem:[%s0] sm:$0xf]
    %v54 = vld [vmem:[#allocation2] sm:$0xf]
    %v55 = vld [vmem:[#allocation2 + $0x4] sm:$0xf]
    %v56 = vld [vmem:[#allocation2 + $0x8] sm:$0xf]
    %v57 = vld [vmem:[#allocation2 + $0xc] sm:$0xf]
    %v58 = vld [vmem:[#allocation2 + $0x10] sm:$0xf]
    %v59 = vld [vmem:[#allocation2 + $0x14] sm:$0xf]
    %v60 = vld [vmem:[#allocation2 + $0x18] sm:$0xf]
    %v61 = vld [vmem:[#allocation2 + $0x1c] sm:$0xf]
    %v62 = vld [vmem:[#allocation2 + $0x20] sm:$0xf]
    %v63 = vld [vmem:[#allocation2 + $0x24] sm:$0xf]
    %v64 = vld [vmem:[#allocation2 + $0x28] sm:$0xf]
    %v65 = vld [vmem:[#allocation2 + $0x2c] sm:$0xf]
    %v66 = vld [vmem:[#allocation2 + $0x30] sm:$0xf]
    %v67 = vld [vmem:[#allocation2 + $0x34] sm:$0xf]
    %v68 = vld [vmem:[#allocation2 + $0x38] sm:$0xf]
    %v69 = vld [vmem:[#allocation2 + $0x3c] sm:$0xf]
    %v70 = vld [vmem:[%s2] sm:$0x1]
    %v72 = vperm.slane %v70, 0
    %v90 = vunpack.c.l.b16 %v54
    %v91 = vunpack.c.l.b16 %v55
    %v92 = vunpack.c.l.b16 %v56
    %v93 = vunpack.c.l.b16 %v57
    %v94 = vunpack.c.l.b16 %v58
    %v95 = vunpack.c.l.b16 %v59
    %v96 = vunpack.c.l.b16 %v60
    %v97 = vunpack.c.l.b16 %v61
    %v98 = vunpack.c.l.b16 %v62
    %v99 = vunpack.c.l.b16 %v63
    %v100 = vunpack.c.l.b16 %v64
    %v101 = vunpack.c.l.b16 %v65
    %v102 = vunpack.c.l.b16 %v66
    %v103 = vunpack.c.l.b16 %v67
    %v104 = vunpack.c.l.b16 %v68
    %v105 = vunpack.c.l.b16 %v69
    %v106 = vpack.c.b16 %v91, %v90
    %v107 = vpack.c.b16 %v93, %v92
    %v108 = vpack.c.b16 %v95, %v94
    %v109 = vpack.c.b16 %v97, %v96
    %v110 = vpack.c.b16 %v99, %v98
    %v111 = vpack.c.b16 %v101, %v100
    %v112 = vpack.c.b16 %v103, %v102
    %v113 = vpack.c.b16 %v105, %v104
    %122 = vmatpush.bf16.msra.mxu0 %v113
    %123 = vmatpush.bf16.msra.mxu0 %v112
    %124 = vmatpush.bf16.msra.mxu0 %v111
    %125 = vmatpush.bf16.msra.mxu0 %v110
    %126 = vmatpush.bf16.msra.mxu0 %v109
    %127 = vmatpush.bf16.msra.mxu0 %v108
    %128 = vmatpush.bf16.msra.mxu0 %v107
    %129 = vmatpush.bf16.msra.mxu0 %v106
    %130 = vmatmul.bf16.gmra.mxu0 %v53
    %v131 = vpop.f32.mrf.mxu0
    %v132 = vadd.f32 %v72, %v131
    %v133 = vpop.f32.mrf.mxu0
    %134 = vdwg.mxu0
    %v135 = vmax.f32 %v132, 0.0
    %v136 = vpack.c.bf16 %v135, %v135
    %v137 = vld [vmem:[#allocation5] sm:$0xf]
    %v138 = vld [vmem:[#allocation5 + $0x4] sm:$0xf]
    %v139 = vld [vmem:[#allocation5 + $0x8] sm:$0xf]
    %v140 = vld [vmem:[#allocation5 + $0xc] sm:$0xf]
    %v141 = vld [vmem:[#allocation5 + $0x10] sm:$0xf]
    %v142 = vld [vmem:[#allocation5 + $0x14] sm:$0xf]
    %v143 = vld [vmem:[#allocation5 + $0x18] sm:$0xf]
    %v144 = vld [vmem:[#allocation5 + $0x1c] sm:$0xf]
    %v145 = vld [vmem:[#allocation5 + $0x20] sm:$0xf]
    %v146 = vld [vmem:[#allocation5 + $0x24] sm:$0xf]
    %v147 = vld [vmem:[#allocation5 + $0x28] sm:$0xf]
    %v148 = vld [vmem:[#allocation5 + $0x2c] sm:$0xf]
    %v149 = vld [vmem:[#allocation5 + $0x30] sm:$0xf]
    %v150 = vld [vmem:[#allocation5 + $0x34] sm:$0xf]
    %v151 = vld [vmem:[#allocation5 + $0x38] sm:$0xf]
    %v152 = vld [vmem:[#allocation5 + $0x3c] sm:$0xf]
    %v153 = vld [vmem:[%s4] sm:$0x1]
    %v155 = vperm.slane %v153, 0
    %v173 = vunpack.c.l.b16 %v137
    %v174 = vunpack.c.l.b16 %v138
    %v175 = vunpack.c.l.b16 %v139
    %v176 = vunpack.c.l.b16 %v140
    %v177 = vunpack.c.l.b16 %v141
    %v178 = vunpack.c.l.b16 %v142
    %v179 = vunpack.c.l.b16 %v143
    %v180 = vunpack.c.l.b16 %v144
    %v181 = vunpack.c.l.b16 %v145
    %v182 = vunpack.c.l.b16 %v146
    %v183 = vunpack.c.l.b16 %v147
    %v184 = vunpack.c.l.b16 %v148
    %v185 = vunpack.c.l.b16 %v149
    %v186 = vunpack.c.l.b16 %v150
    %v187 = vunpack.c.l.b16 %v151
    %v188 = vunpack.c.l.b16 %v152
    %v189 = vpack.c.b16 %v174, %v173
    %v190 = vpack.c.b16 %v176, %v175
    %v191 = vpack.c.b16 %v178, %v177
    %v192 = vpack.c.b16 %v180, %v179
    %v193 = vpack.c.b16 %v182, %v181
    %v194 = vpack.c.b16 %v184, %v183
    %v195 = vpack.c.b16 %v186, %v185
    %v196 = vpack.c.b16 %v188, %v187
    %205 = vmatpush.bf16.msra.mxu0 %v196
    %206 = vmatpush.bf16.msra.mxu0 %v195
    %207 = vmatpush.bf16.msra.mxu0 %v194
    %208 = vmatpush.bf16.msra.mxu0 %v193
    %209 = vmatpush.bf16.msra.mxu0 %v192
    %210 = vmatpush.bf16.msra.mxu0 %v191
    %211 = vmatpush.bf16.msra.mxu0 %v190
    %212 = vmatpush.bf16.msra.mxu0 %v189
    %213 = vmatmul.bf16.gmra.mxu0 %v136
    %v214 = vpop.f32.mrf.mxu0
    %v215 = vadd.f32 %v155, %v214
    %v216 = vpop.f32.mrf.mxu0
    %217 = vdwg.mxu0
    %v218 = vmax.f32 %v215, 0.0
    %219 = vst [vmem:[#allocation7] sm:$0xff] %v218
    // Predicated region
    $region30: #{netfc_forward.1} parent=1 // pred_check
      _
    $region31: #{netfc_forward.1} parent=1 // pred_check_branch
      %221 = sbr.rel (0) target = $region33
    $region32: #{netfc_forward.1} parent=1 // pred_region
      %223 = vsyncadd [#allocation4], 0
      %s225 = sshll.u32 [#allocation7], 4
      %s226 = int_to_ptr.vmem [resolvable:$true] %s225
      %s227 = sshll.u32 %s5, 4
      %s228 = int_to_ptr.hbm [resolvable:$true] %s227
      %230 = dma.vmem_to_hbm [thread:$0]  %s226, 128, %s228, [#allocation4]
    $region33: #{netfc_forward.1} parent=1 // pred_fallthru
      _
    // Predicated region
    $region34: #{netfc_forward.1} parent=1 // pred_check
      _
    $region35: #{netfc_forward.1} parent=1 // pred_check_branch
      %232 = sbr.rel (0) target = $region37
    $region36: #{netfc_forward.1} parent=1 // pred_region
      %234 = dma.done [#allocation4], 128
    $region37: #{netfc_forward.1} parent=1 // pred_fallthru
      _
    %235 = vsyncpa [#allocation3], 1
    %236 = vsyncpa [#allocation6], 1
    %237 = vsyncpa [#allocation4], 1

</llo_original>
